<compile_context>
chip_gen: v5e
topology: v5e:2x2
jax: 0.10.0
libtpu: 0.0.40
codegen_flags: <defaults>
</compile_context>

<pallas_src>
import math
from functools import partial

import jax
import jax.numpy as jnp
from jax.experimental import pallas as pl
from jax.experimental.pallas import tpu as pltpu

LANE = 128  # TPU vreg lane width


def _round_up(x, m):
    return (x + m - 1) // m * m


def _gru_cell_kernel(m_ref, h_ref, w_ref, b_ref, out_ref, *, hp):
    """One fused GRU step for a tile of rows.

    m_ref : (tm, INp)        bf16 message inputs (GRU x_t), lane-padded
    h_ref : (tm, Hp)         bf16 previous hidden state,   lane-padded
    w_ref : (INp+Hp, 4*Hp)   bf16 packed weights  [Wr | Wz | W_ih_n | W_hh_n]
    b_ref : (1, 4*Hp)        f32  packed bias     [b_r(sum) | b_z(sum) | b_ih_n | b_hh_n]
    out_ref: (tm, Hp)        f32  new hidden state (lane-padded)
    """
    x = m_ref[...]
    h = h_ref[...]

    # Fused MXU hot path: one (tm, INp+Hp) x (INp+Hp, 4Hp) matmul, f32 acc.
    a = jnp.concatenate([x, h], axis=1)
    g = jnp.dot(a, w_ref[...], preferred_element_type=jnp.float32) + b_ref[...]

    # Gate slices land on 128-lane (vreg) boundaries since hp % 128 == 0.
    r = jax.nn.sigmoid(g[:, 0:hp])
    z = jax.nn.sigmoid(g[:, hp:2 * hp])
    n = jnp.tanh(g[:, 2 * hp:3 * hp] + r * g[:, 3 * hp:4 * hp])

    h_f32 = h.astype(jnp.float32)
    out_ref[...] = ((1.0 - z) * n + z * h_f32).astype(out_ref.dtype)


def gru_update(m2d, h2d, w_packed, b_packed, *, tm=512):
    """Pallas call over row tiles of the flattened, lane-padded (M, D) problem.

    m2d: (M, INp) bf16, h2d: (M, Hp) bf16 — both feature-padded to 128 lanes.
    Returns (M, Hp) f32.
    """
    M, inp = m2d.shape
    Mh, hp = h2d.shape
    assert M == Mh
    din = inp + hp
    assert w_packed.shape == (din, 4 * hp)
    assert b_packed.shape == (1, 4 * hp)

    # Pick the row tile: large for throughput, shrink to the (8-aligned) row
    # count for small problems, and zero-pad rows so any M works.
    tm_eff = min(tm, _round_up(M, 8))
    m_pad = _round_up(M, tm_eff)
    if m_pad != M:
        m2d = jnp.pad(m2d, ((0, m_pad - M), (0, 0)))
        h2d = jnp.pad(h2d, ((0, m_pad - M), (0, 0)))

    kernel = partial(_gru_cell_kernel, hp=hp)

    out = pl.pallas_call(
        kernel,
        out_shape=jax.ShapeDtypeStruct((m_pad, hp), jnp.float32),
        grid_spec=pltpu.PrefetchScalarGridSpec(
            num_scalar_prefetch=0,
            grid=(m_pad // tm_eff,),
            in_specs=[
                pl.BlockSpec((tm_eff, inp), lambda i: (i, 0)),     # x tile
                pl.BlockSpec((tm_eff, hp), lambda i: (i, 0)),      # h tile
                # Resident packed weights/bias (constant index_map). At large
                # H, single-buffer these (pl.Buffered(1) or one-time DMA into
                # scratch) to respect v7x's 64 MiB VMEM; irrelevant at H=32.
                pl.BlockSpec((din, 4 * hp), lambda i: (0, 0)),     # W packed
                pl.BlockSpec((1, 4 * hp), lambda i: (0, 0)),       # b packed
            ],
            out_specs=pl.BlockSpec((tm_eff, hp), lambda i: (i, 0)),
        ),
        compiler_params=pltpu.CompilerParams(
            dimension_semantics=("parallel",)),
    )(m2d, h2d, w_packed, b_packed)
    return out[:M]


def update_function_forward(h_v, m_v, params):
    """Equivalent of UpdateFunction.forward (u_mpnn)."""
    B, N, H = h_v.shape
    in_m = m_v.shape[2]
    inp, hp = params["in_pad"], params["h_pad"]

    # bf16 across the HBM boundary; zero-pad features to the 128-lane width.
    m2d = jnp.pad(m_v.reshape(-1, in_m).astype(jnp.bfloat16),
                  ((0, 0), (0, inp - in_m)))
    h2d = jnp.pad(h_v.reshape(-1, H).astype(jnp.bfloat16),
                  ((0, 0), (0, hp - H)))

    h_new = gru_update(m2d, h2d, params["w_packed"], params["b_packed"])
    return h_new[:, :H].reshape(B, N, H)


def pack_gru_params(torch_params, in_m, hidden, lane=LANE):
    """Pack PyTorch-layout GRU params into the fused, lane-padded layout.

    torch layout: w_ih (3H, IN), w_hh (3H, H), b_ih/b_hh (3H,); gate order [r,z,n].
    Packed weight (INp+Hp, 4Hp) columns: [Wr(ih+hh) | Wz(ih+hh) | W_ih_n | W_hh_n].
    Packed bias   (1, 4Hp):              [b_ih_r+b_hh_r | b_ih_z+b_hh_z | b_ih_n | b_hh_n].
    """
    H = hidden
    inp = _round_up(in_m, lane)
    hp = _round_up(H, lane)
    w_ih = torch_params["w_ih"]
    w_hh = torch_params["w_hh"]
    b_ih = torch_params["b_ih"]
    b_hh = torch_params["b_hh"]

    W = jnp.zeros((inp + hp, 4 * hp), jnp.float32)
    # r gate
    W = W.at[:in_m, 0:H].set(w_ih[0:H].T)
    W = W.at[inp:inp + H, 0:H].set(w_hh[0:H].T)
    # z gate
    W = W.at[:in_m, hp:hp + H].set(w_ih[H:2 * H].T)
    W = W.at[inp:inp + H, hp:hp + H].set(w_hh[H:2 * H].T)
    # n gate (input and hidden contributions kept separate for the r* term)
    W = W.at[:in_m, 2 * hp:2 * hp + H].set(w_ih[2 * H:3 * H].T)
    W = W.at[inp:inp + H, 3 * hp:3 * hp + H].set(w_hh[2 * H:3 * H].T)

    b = jnp.zeros((1, 4 * hp), jnp.float32)
    b = b.at[0, 0:H].set(b_ih[0:H] + b_hh[0:H])
    b = b.at[0, hp:hp + H].set(b_ih[H:2 * H] + b_hh[H:2 * H])
    b = b.at[0, 2 * hp:2 * hp + H].set(b_ih[2 * H:3 * H])
    b = b.at[0, 3 * hp:3 * hp + H].set(b_hh[2 * H:3 * H])

    return {
        "w_packed": W.astype(jnp.bfloat16),   # bf16 MXU operand / half VMEM
        "b_packed": b,                        # f32, added post f32-accumulation
        "in_pad": inp,
        "h_pad": hp,
        "in_m": in_m,
        "hidden": H,
    }


def init_gru_params(key, in_m, hidden):
    """Deterministic init matching nn.GRU(in_m, hidden) parameter shapes."""
    k1, k2, k3, k4 = jax.random.split(key, 4)
    bound = 1.0 / math.sqrt(hidden)
    torch_params = {
        "w_ih": jax.random.uniform(k1, (3 * hidden, in_m), jnp.float32, -bound, bound),
        "w_hh": jax.random.uniform(k2, (3 * hidden, hidden), jnp.float32, -bound, bound),
        "b_ih": jax.random.uniform(k3, (3 * hidden,), jnp.float32, -bound, bound),
        "b_hh": jax.random.uniform(k4, (3 * hidden,), jnp.float32, -bound, bound),
    }
    return torch_params, pack_gru_params(torch_params, in_m, hidden)


def _reference_forward(h_v, m_v, torch_params):
    """Pure-JAX f32 GRU-cell reference (PyTorch semantics) for checking."""
    B, N, H = h_v.shape
    x = m_v.reshape(-1, m_v.shape[2]).astype(jnp.float32)
    h = h_v.reshape(-1, H).astype(jnp.float32)
    hi = jax.lax.Precision.HIGHEST
    gi = jnp.dot(x, torch_params["w_ih"].T, precision=hi) + torch_params["b_ih"]
    gh = jnp.dot(h, torch_params["w_hh"].T, precision=hi) + torch_params["b_hh"]
    r = jax.nn.sigmoid(gi[:, :H] + gh[:, :H])
    z = jax.nn.sigmoid(gi[:, H:2 * H] + gh[:, H:2 * H])
    n = jnp.tanh(gi[:, 2 * H:] + r * gh[:, 2 * H:])
    return ((1.0 - z) * n + z * h).reshape(B, N, H)


if __name__ == "__main__":
    # Small shapes consistent with the module: args = {'in_m': 32, 'out': 32}
    B, N = 2, 8          # batch x nodes  ->  B*N = 16 rows (single grid step)
    IN_M, OUT = 32, 32   # message dim, hidden dim

    key = jax.random.PRNGKey(0)
    k_h, k_m, k_p = jax.random.split(key, 3)

    h_v = jax.random.normal(k_h, (B, N, OUT), jnp.float32)
    m_v = jax.random.normal(k_m, (B, N, IN_M), jnp.float32)
    torch_params, packed_params = init_gru_params(k_p, IN_M, OUT)

    out = update_function_forward(h_v, m_v, packed_params)
    out = jax.block_until_ready(out)

    ref = _reference_forward(h_v, m_v, torch_params)
    assert out.shape == h_v.shape
    # bf16 operands with f32 accumulation: loosen tolerance vs. pure-f32 ref.
    assert jnp.allclose(out, ref, atol=3e-2, rtol=3e-2), float(
        jnp.max(jnp.abs(out - ref)))

    print("KERNEL_OK")
</pallas_src>

<mosaic_0001>
module attributes {stable_mosaic.version = 11 : i64} {
  func.func @_gru_cell_kernel(%arg0: i32, %arg1: memref<16x128xbf16, #tpu.memory_space<vmem>>, %arg2: memref<16x128xbf16, #tpu.memory_space<vmem>>, %arg3: memref<256x512xbf16, #tpu.memory_space<vmem>>, %arg4: memref<1x512xf32, #tpu.memory_space<vmem>>, %arg5: memref<16x128xf32, #tpu.memory_space<vmem>>) attributes {dimension_semantics = [#tpu.dimension_semantics<parallel>], iteration_bounds = array<i64: 1>, scalar_prefetch = 0 : i64, scratch_operands = 0 : i64, tpu.core_type = #tpu.core_type<tc>, window_params = [{transform_indices = @transform_0, window_bounds = array<i64: 16, 128>}, {transform_indices = @transform_1, window_bounds = array<i64: 16, 128>}, {pipeline_mode = #tpu.pipeline_mode<synchronous>, transform_indices = @transform_2, window_bounds = array<i64: 256, 512>}, {pipeline_mode = #tpu.pipeline_mode<synchronous>, transform_indices = @transform_3, window_bounds = array<i64: 1, 512>}, {transform_indices = @transform_4, window_bounds = array<i64: 16, 128>}]} {
    %c0 = arith.constant 0 : index
    %c0_0 = arith.constant 0 : index
    %0 = vector.load %arg1[%c0, %c0_0] : memref<16x128xbf16, #tpu.memory_space<vmem>>, vector<16x128xbf16>
    %c0_1 = arith.constant 0 : index
    %c0_2 = arith.constant 0 : index
    %1 = vector.load %arg2[%c0_1, %c0_2] : memref<16x128xbf16, #tpu.memory_space<vmem>>, vector<16x128xbf16>
    %2 = tpu.concatenate %0, %1 in 1 : vector<16x128xbf16>, vector<16x128xbf16> -> vector<16x256xbf16>
    %c0_3 = arith.constant 0 : index
    %c0_4 = arith.constant 0 : index
    %3 = vector.load %arg3[%c0_3, %c0_4] : memref<256x512xbf16, #tpu.memory_space<vmem>>, vector<256x512xbf16>
    %cst = arith.constant dense<0.000000e+00> : vector<16x512xf32>
    %4 = tpu.matmul %2, %3, %cst {dimension_numbers = #tpu.dot_dimension_numbers<[1], [0], [0], [1], [0, 0, 1, 1], [], []>} : vector<16x256xbf16>, vector<256x512xbf16>, vector<16x512xf32> -> vector<16x512xf32>
    %c0_5 = arith.constant 0 : index
    %c0_6 = arith.constant 0 : index
    %5 = vector.load %arg4[%c0_5, %c0_6] : memref<1x512xf32, #tpu.memory_space<vmem>>, vector<1x512xf32>
    %6 = vector.broadcast %5 : vector<1x512xf32> to vector<16x512xf32>
    %7 = arith.addf %4, %6 : vector<16x512xf32>
    %8 = vector.extract_strided_slice %7 {offsets = [0, 0], sizes = [16, 128], strides = [1, 1]} : vector<16x512xf32> to vector<16x128xf32>
    %9 = arith.negf %8 : vector<16x128xf32>
    %10 = math.exp %9 : vector<16x128xf32>
    %cst_7 = arith.constant 1.000000e+00 : f32
    %11 = vector.broadcast %cst_7 : f32 to vector<16x128xf32>
    %12 = arith.addf %11, %10 : vector<16x128xf32>
    %13 = arith.divf %11, %12 : vector<16x128xf32>
    %14 = vector.extract_strided_slice %7 {offsets = [0, 128], sizes = [16, 128], strides = [1, 1]} : vector<16x512xf32> to vector<16x128xf32>
    %15 = arith.negf %14 : vector<16x128xf32>
    %16 = math.exp %15 : vector<16x128xf32>
    %cst_8 = arith.constant 1.000000e+00 : f32
    %17 = vector.broadcast %cst_8 : f32 to vector<16x128xf32>
    %18 = arith.addf %17, %16 : vector<16x128xf32>
    %19 = arith.divf %17, %18 : vector<16x128xf32>
    %20 = vector.extract_strided_slice %7 {offsets = [0, 256], sizes = [16, 128], strides = [1, 1]} : vector<16x512xf32> to vector<16x128xf32>
    %21 = vector.extract_strided_slice %7 {offsets = [0, 384], sizes = [16, 128], strides = [1, 1]} : vector<16x512xf32> to vector<16x128xf32>
    %22 = arith.mulf %13, %21 : vector<16x128xf32>
    %23 = arith.addf %20, %22 : vector<16x128xf32>
    %24 = math.tanh %23 : vector<16x128xf32>
    %25 = arith.extf %1 : vector<16x128xbf16> to vector<16x128xf32>
    %cst_9 = arith.constant 1.000000e+00 : f32
    %26 = vector.broadcast %cst_9 : f32 to vector<16x128xf32>
    %27 = arith.subf %26, %19 : vector<16x128xf32>
    %28 = arith.mulf %27, %24 : vector<16x128xf32>
    %29 = arith.mulf %19, %25 : vector<16x128xf32>
    %30 = arith.addf %28, %29 : vector<16x128xf32>
    %c0_10 = arith.constant 0 : index
    %c0_11 = arith.constant 0 : index
    %31 = vector.load %arg5[%c0_10, %c0_11] : memref<16x128xf32, #tpu.memory_space<vmem>>, vector<16x128xf32>
    tpu.vector_store %arg5[%c0_10, %c0_11], %30 {strides = array<i32>} : memref<16x128xf32, #tpu.memory_space<vmem>>, vector<16x128xf32>,
    return
  }
  func.func @transform_0(%arg0: i32) -> (i32, i32) {
    %c0_i32 = arith.constant 0 : i32
    %c0_i32_0 = arith.constant 0 : i32
    return %arg0, %c0_i32 : i32, i32
  }
  func.func @transform_1(%arg0: i32) -> (i32, i32) {
    %c0_i32 = arith.constant 0 : i32
    %c0_i32_0 = arith.constant 0 : i32
    return %arg0, %c0_i32 : i32, i32
  }
  func.func @transform_2(%arg0: i32) -> (i32, i32) {
    %c0_i32 = arith.constant 0 : i32
    %c0_i32_0 = arith.constant 0 : i32
    %c0_i32_1 = arith.constant 0 : i32
    return %c0_i32, %c0_i32_0 : i32, i32
  }
  func.func @transform_3(%arg0: i32) -> (i32, i32) {
    %c0_i32 = arith.constant 0 : i32
    %c0_i32_0 = arith.constant 0 : i32
    %c0_i32_1 = arith.constant 0 : i32
    return %c0_i32, %c0_i32_0 : i32, i32
  }
  func.func @transform_4(%arg0: i32) -> (i32, i32) {
    %c0_i32 = arith.constant 0 : i32
    %c0_i32_0 = arith.constant 0 : i32
    return %arg0, %c0_i32 : i32, i32
  }
}

</mosaic_0001>

<llo_original>
// kernel: tpu_custom_call.1
$region0: #{tpu_custom_call.1}
  #allocation0 [shape = 'u32[]', space=smem, size = 0x4, offset = 0x4, fixed_abs, tag = 'smem constant byte address 0x4 - core index']
  #allocation1 [shape = 'u32[72,128]{1,0:T(1,128)}', space=vmem, size = 0x9000, scoped, tag = 'internal scratch']
  %s0 = inlined_call_operand.hbm [shape: bf16[16,128], index: 0, kind: input, shape index: {}]
  %s1 = inlined_call_operand.hbm [shape: bf16[16,128], index: 1, kind: input, shape index: {}]
  %s2 = inlined_call_operand.hbm [shape: bf16[256,512], index: 2, kind: input, shape index: {}]
  %s3 = inlined_call_operand.hbm [shape: f32[1,512], index: 3, kind: input, shape index: {}]
  %s4 = inlined_call_operand.hbm [shape: f32[16,128], index: 4, kind: output, shape index: {}]
  %s5 = sld [smem:[#allocation0]]
  $region42: #{tpu_custom_call.1} parent=0
    _
  %s7 = ssub.s32 1, %s5
  %s8 = scalar_select 0, %s7, %s5
  $region1: #{tpu_custom_call.1} parent=0
    #allocation2 [shape = 'u8[4096]{0}', space=vmem, size = 0x1000, scoped, tag = 'input window, operand 0, single buffered']
    #allocation3 [shape = 's32[1]{0}', space=sflag, size = 0x4, scoped, tag = 'scoped memory for tpu_custom_call.1']
    #allocation4 [shape = 's32[1]{0}', space=sflag, size = 0x4, scoped, tag = 'scoped memory for tpu_custom_call.1']
    #allocation5 [shape = 'u8[4096]{0}', space=vmem, size = 0x1000, scoped, tag = 'input window, operand 1, single buffered']
    #allocation6 [shape = 's32[1]{0}', space=sflag, size = 0x4, scoped, tag = 'scoped memory for tpu_custom_call.1']
    #allocation7 [shape = 'u8[262144]{0}', space=vmem, size = 0x40000, scoped, tag = 'input window, operand 2, single buffered']
    #allocation8 [shape = 'u8[2048]{0}', space=vmem, size = 0x800, scoped, tag = 'input window, operand 3, single buffered']
    #allocation9 [shape = 's32[1]{0}', space=sflag, size = 0x4, scoped, tag = 'scoped memory for tpu_custom_call.1']
    #allocation10 [shape = 'u8[8192]{0}', space=vmem, size = 0x2000, scoped, tag = 'output window, operand 0, single buffered']
    %9 = vsyncpa [#allocation3], 0
    %10 = vsyncpa [#allocation6], 0
    %11 = vsyncpa [#allocation9], 0
    %12 = vsyncpa [#allocation4], 0
    // Predicated region
    $region2: #{tpu_custom_call.1} parent=1 // pred_check
      _
    $region3: #{tpu_custom_call.1} parent=1 // pred_check_branch
      %14 = sbr.rel (0) target = $region5
    $region4: #{tpu_custom_call.1} parent=1 // pred_region
      %16 = vsyncadd [#allocation3], 0
      %s17 = sshll.u32 %s0, 4
      %s18 = int_to_ptr.hbm [resolvable:$true] %s17
      %s19 = sshll.u32 [#allocation2], 4
      %s20 = int_to_ptr.vmem [resolvable:$true] %s19
      %25 = dma.hbm_to_vmem [thread:$0]  %s18, 128, %s20, [#allocation3], 64, 64, 4
    $region5: #{tpu_custom_call.1} parent=1 // pred_fallthru
      _
    // Predicated region
    $region6: #{tpu_custom_call.1} parent=1 // pred_check
      _
    $region7: #{tpu_custom_call.1} parent=1 // pred_check_branch
      %27 = sbr.rel (0) target = $region9
    $region8: #{tpu_custom_call.1} parent=1 // pred_region
      %29 = vsyncadd [#allocation6], 0
      %s30 = sshll.u32 %s1, 4
      %s31 = int_to_ptr.hbm [resolvable:$true] %s30
      %s32 = sshll.u32 [#allocation5], 4
      %s33 = int_to_ptr.vmem [resolvable:$true] %s32
      %38 = dma.hbm_to_vmem [thread:$0]  %s31, 128, %s33, [#allocation6], 64, 64, 4
    $region9: #{tpu_custom_call.1} parent=1 // pred_fallthru
      _
    // Predicated region
    $region10: #{tpu_custom_call.1} parent=1 // pred_check
      _
    $region11: #{tpu_custom_call.1} parent=1 // pred_check_branch
      %40 = sbr.rel (0) target = $region13
    $region12: #{tpu_custom_call.1} parent=1 // pred_region
      %42 = vsyncadd [#allocation6], 0
      %s43 = sshll.u32 %s2, 4
      %s44 = int_to_ptr.hbm [resolvable:$true] %s43
      %s45 = sshll.u32 [#allocation7], 4
      %s46 = int_to_ptr.vmem [resolvable:$true] %s45
      %51 = dma.hbm_to_vmem [thread:$0]  %s44, 8192, %s46, [#allocation6], 256, 256, 16
    $region13: #{tpu_custom_call.1} parent=1 // pred_fallthru
      _
    // Predicated region
    $region14: #{tpu_custom_call.1} parent=1 // pred_check
      _
    $region15: #{tpu_custom_call.1} parent=1 // pred_check_branch
      %53 = sbr.rel (0) target = $region17
    $region16: #{tpu_custom_call.1} parent=1 // pred_region
      %55 = vsyncadd [#allocation9], 0
      %s57 = sshll.u32 %s3, 4
      %s58 = int_to_ptr.hbm [resolvable:$true] %s57
      %s59 = sshll.u32 [#allocation8], 4
      %s60 = int_to_ptr.vmem [resolvable:$true] %s59
      %62 = dma.hbm_to_vmem [thread:$0]  %s58, 64, %s60, [#allocation9]
    $region17: #{tpu_custom_call.1} parent=1 // pred_fallthru
      _
    // Predicated region
    $region18: #{tpu_custom_call.1} parent=1 // pred_check
      _
    $region19: #{tpu_custom_call.1} parent=1 // pred_check_branch
      %64 = sbr.rel (0) target = $region21
    $region20: #{tpu_custom_call.1} parent=1 // pred_region
      %66 = dma.done [#allocation3], 128
    $region21: #{tpu_custom_call.1} parent=1 // pred_fallthru
      _
    // Predicated region
    $region22: #{tpu_custom_call.1} parent=1 // pred_check
      _
    $region23: #{tpu_custom_call.1} parent=1 // pred_check_branch
      %68 = sbr.rel (0) target = $region25
    $region24: #{tpu_custom_call.1} parent=1 // pred_region
      %70 = dma.done [#allocation6], 128
    $region25: #{tpu_custom_call.1} parent=1 // pred_fallthru
      _
    // Predicated region
    $region26: #{tpu_custom_call.1} parent=1 // pred_check
      _
    $region27: #{tpu_custom_call.1} parent=1 // pred_check_branch
      %72 = sbr.rel (0) target = $region29
    $region28: #{tpu_custom_call.1} parent=1 // pred_region
      %74 = dma.done [#allocation6], 8192
    $region29: #{tpu_custom_call.1} parent=1 // pred_fallthru
      _
    // Predicated region
    $region30: #{tpu_custom_call.1} parent=1 // pred_check
      _
    $region31: #{tpu_custom_call.1} parent=1 // pred_check_branch
      %76 = sbr.rel (0) target = $region33
    $region32: #{tpu_custom_call.1} parent=1 // pred_region
      %78 = dma.done [#allocation9], 64
    $region33: #{tpu_custom_call.1} parent=1 // pred_fallthru
      _
    %v79 = vld [vmem:[#allocation2] sm:$0xf]
    %v80 = vld [vmem:[#allocation2 + $0x4] sm:$0xf]
    %v81 = vld [vmem:[#allocation5] sm:$0xf]
    %v82 = vld [vmem:[#allocation5 + $0x4] sm:$0xf]
    %v85 = vunpack.c.l.b16 %v79
    %v86 = vunpack.c.l.b16 %v80
    %v87 = vpack.c.b16 %v86, %v85
    %v91 = vunpack.c.l.b16 %v81
    %v92 = vunpack.c.l.b16 %v82
    %v93 = vpack.c.b16 %v92, %v91
    %v95 = vld [vmem:[#allocation7] sm:$0xff]
    %v96 = vld [vmem:[#allocation7 + $0x8] sm:$0xff]
    %v97 = vld [vmem:[#allocation7 + $0x10] sm:$0xff]
    %v98 = vld [vmem:[#allocation7 + $0x18] sm:$0xff]
    %v99 = vld [vmem:[#allocation7 + $0x20] sm:$0xff]
    %v100 = vld [vmem:[#allocation7 + $0x28] sm:$0xff]
    %v101 = vld [vmem:[#allocation7 + $0x30] sm:$0xff]
    %v102 = vld [vmem:[#allocation7 + $0x38] sm:$0xff]
    %v103 = vld [vmem:[#allocation7 + $0x40] sm:$0xff]
    %v104 = vld [vmem:[#allocation7 + $0x48] sm:$0xff]
    %v105 = vld [vmem:[#allocation7 + $0x50] sm:$0xff]
    %v106 = vld [vmem:[#allocation7 + $0x58] sm:$0xff]
    %v107 = vld [vmem:[#allocation7 + $0x60] sm:$0xff]
    %v108 = vld [vmem:[#allocation7 + $0x68] sm:$0xff]
    %v109 = vld [vmem:[#allocation7 + $0x70] sm:$0xff]
    %v110 = vld [vmem:[#allocation7 + $0x78] sm:$0xff]
    %v111 = vld [vmem:[#allocation7 + $0x80] sm:$0xff]
    %v112 = vld [vmem:[#allocation7 + $0x88] sm:$0xff]
    %v113 = vld [vmem:[#allocation7 + $0x90] sm:$0xff]
    %v114 = vld [vmem:[#allocation7 + $0x98] sm:$0xff]
    %v115 = vld [vmem:[#allocation7 + $0xa0] sm:$0xff]
    %v116 = vld [vmem:[#allocation7 + $0xa8] sm:$0xff]
    %v117 = vld [vmem:[#allocation7 + $0xb0] sm:$0xff]
    %v118 = vld [vmem:[#allocation7 + $0xb8] sm:$0xff]
    %v119 = vld [vmem:[#allocation7 + $0xc0] sm:$0xff]
    %v120 = vld [vmem:[#allocation7 + $0xc8] sm:$0xff]
    %v121 = vld [vmem:[#allocation7 + $0xd0] sm:$0xff]
    %v122 = vld [vmem:[#allocation7 + $0xd8] sm:$0xff]
    %v123 = vld [vmem:[#allocation7 + $0xe0] sm:$0xff]
    %v124 = vld [vmem:[#allocation7 + $0xe8] sm:$0xff]
    %v125 = vld [vmem:[#allocation7 + $0xf0] sm:$0xff]
    %v126 = vld [vmem:[#allocation7 + $0xf8] sm:$0xff]
    %v127 = vld [vmem:[#allocation7 + $0x100] sm:$0xff]
    %v128 = vld [vmem:[#allocation7 + $0x108] sm:$0xff]
    %v129 = vld [vmem:[#allocation7 + $0x110] sm:$0xff]
    %v130 = vld [vmem:[#allocation7 + $0x118] sm:$0xff]
    %v131 = vld [vmem:[#allocation7 + $0x120] sm:$0xff]
    %v132 = vld [vmem:[#allocation7 + $0x128] sm:$0xff]
    %v133 = vld [vmem:[#allocation7 + $0x130] sm:$0xff]
    %v134 = vld [vmem:[#allocation7 + $0x138] sm:$0xff]
    %v135 = vld [vmem:[#allocation7 + $0x140] sm:$0xff]
    %v136 = vld [vmem:[#allocation7 + $0x148] sm:$0xff]
    %v137 = vld [vmem:[#allocation7 + $0x150] sm:$0xff]
    %v138 = vld [vmem:[#allocation7 + $0x158] sm:$0xff]
    %v139 = vld [vmem:[#allocation7 + $0x160] sm:$0xff]
    %v140 = vld [vmem:[#allocation7 + $0x168] sm:$0xff]
    %v141 = vld [vmem:[#allocation7 + $0x170] sm:$0xff]
    %v142 = vld [vmem:[#allocation7 + $0x178] sm:$0xff]
    %v143 = vld [vmem:[#allocation7 + $0x180] sm:$0xff]
    %v144 = vld [vmem:[#allocation7 + $0x188] sm:$0xff]
    %v145 = vld [vmem:[#allocation7 + $0x190] sm:$0xff]
    %v146 = vld [vmem:[#allocation7 + $0x198] sm:$0xff]
    %v147 = vld [vmem:[#allocation7 + $0x1a0] sm:$0xff]
    %v148 = vld [vmem:[#allocation7 + $0x1a8] sm:$0xff]
    %v149 = vld [vmem:[#allocation7 + $0x1b0] sm:$0xff]
    %v150 = vld [vmem:[#allocation7 + $0x1b8] sm:$0xff]
    %v151 = vld [vmem:[#allocation7 + $0x1c0] sm:$0xff]
    %v152 = vld [vmem:[#allocation7 + $0x1c8] sm:$0xff]
    %v153 = vld [vmem:[#allocation7 + $0x1d0] sm:$0xff]
    %v154 = vld [vmem:[#allocation7 + $0x1d8] sm:$0xff]
    %v155 = vld [vmem:[#allocation7 + $0x1e0] sm:$0xff]
    %v156 = vld [vmem:[#allocation7 + $0x1e8] sm:$0xff]
    %v157 = vld [vmem:[#allocation7 + $0x1f0] sm:$0xff]
    %v158 = vld [vmem:[#allocation7 + $0x1f8] sm:$0xff]
    %v159 = vld [vmem:[#allocation8] sm:$0xf]
    %v161 = vperm.slane %v159, 0
    %v162 = vperm.slane %v159, 1
    %v163 = vperm.slane %v159, 2
    %v164 = vperm.slane %v159, 3
    %v233 = vunpack.c.l.b16 %v95
    %v234 = vunpack.c.h.b16 %v95
    %v235 = vunpack.c.l.b16 %v96
    %v236 = vunpack.c.h.b16 %v96
    %v237 = vunpack.c.l.b16 %v97
    %v238 = vunpack.c.h.b16 %v97
    %v239 = vunpack.c.l.b16 %v98
    %v240 = vunpack.c.h.b16 %v98
    %v241 = vunpack.c.l.b16 %v99
    %v242 = vunpack.c.h.b16 %v99
    %v243 = vunpack.c.l.b16 %v100
    %v244 = vunpack.c.h.b16 %v100
    %v245 = vunpack.c.l.b16 %v101
    %v246 = vunpack.c.h.b16 %v101
    %v247 = vunpack.c.l.b16 %v102
    %v248 = vunpack.c.h.b16 %v102
    %v249 = vunpack.c.l.b16 %v103
    %v250 = vunpack.c.h.b16 %v103
    %v251 = vunpack.c.l.b16 %v104
    %v252 = vunpack.c.h.b16 %v104
    %v253 = vunpack.c.l.b16 %v105
    %v254 = vunpack.c.h.b16 %v105
    %v255 = vunpack.c.l.b16 %v106
    %v256 = vunpack.c.h.b16 %v106
    %v257 = vunpack.c.l.b16 %v107
    %v258 = vunpack.c.h.b16 %v107
    %v259 = vunpack.c.l.b16 %v108
    %v260 = vunpack.c.h.b16 %v108
    %v261 = vunpack.c.l.b16 %v109
    %v262 = vunpack.c.h.b16 %v109
    %v263 = vunpack.c.l.b16 %v110
    %v264 = vunpack.c.h.b16 %v110
    %v265 = vunpack.c.l.b16 %v111
    %v266 = vunpack.c.h.b16 %v111
    %v267 = vunpack.c.l.b16 %v112
    %v268 = vunpack.c.h.b16 %v112
    %v269 = vunpack.c.l.b16 %v113
    %v270 = vunpack.c.h.b16 %v113
    %v271 = vunpack.c.l.b16 %v114
    %v272 = vunpack.c.h.b16 %v114
    %v273 = vunpack.c.l.b16 %v115
    %v274 = vunpack.c.h.b16 %v115
    %v275 = vunpack.c.l.b16 %v116
    %v276 = vunpack.c.h.b16 %v116
    %v277 = vunpack.c.l.b16 %v117
    %v278 = vunpack.c.h.b16 %v117
    %v279 = vunpack.c.l.b16 %v118
    %v280 = vunpack.c.h.b16 %v118
    %v281 = vunpack.c.l.b16 %v119
    %v282 = vunpack.c.h.b16 %v119
    %v283 = vunpack.c.l.b16 %v120
    %v284 = vunpack.c.h.b16 %v120
    %v285 = vunpack.c.l.b16 %v121
    %v286 = vunpack.c.h.b16 %v121
    %v287 = vunpack.c.l.b16 %v122
    %v288 = vunpack.c.h.b16 %v122
    %v289 = vunpack.c.l.b16 %v123
    %v290 = vunpack.c.h.b16 %v123
    %v291 = vunpack.c.l.b16 %v124
    %v292 = vunpack.c.h.b16 %v124
    %v293 = vunpack.c.l.b16 %v125
    %v294 = vunpack.c.h.b16 %v125
    %v295 = vunpack.c.l.b16 %v126
    %v296 = vunpack.c.h.b16 %v126
    %v297 = vunpack.c.l.b16 %v127
    %v298 = vunpack.c.h.b16 %v127
    %v299 = vunpack.c.l.b16 %v128
    %v300 = vunpack.c.h.b16 %v128
    %v301 = vunpack.c.l.b16 %v129
    %v302 = vunpack.c.h.b16 %v129
    %v303 = vunpack.c.l.b16 %v130
    %v304 = vunpack.c.h.b16 %v130
    %v305 = vunpack.c.l.b16 %v131
    %v306 = vunpack.c.h.b16 %v131
    %v307 = vunpack.c.l.b16 %v132
    %v308 = vunpack.c.h.b16 %v132
    %v309 = vunpack.c.l.b16 %v133
    %v310 = vunpack.c.h.b16 %v133
    %v311 = vunpack.c.l.b16 %v134
    %v312 = vunpack.c.h.b16 %v134
    %v313 = vunpack.c.l.b16 %v135
    %v314 = vunpack.c.h.b16 %v135
    %v315 = vunpack.c.l.b16 %v136
    %v316 = vunpack.c.h.b16 %v136
    %v317 = vunpack.c.l.b16 %v137
    %v318 = vunpack.c.h.b16 %v137
    %v319 = vunpack.c.l.b16 %v138
    %v320 = vunpack.c.h.b16 %v138
    %v321 = vunpack.c.l.b16 %v139
    %v322 = vunpack.c.h.b16 %v139
    %v323 = vunpack.c.l.b16 %v140
    %v324 = vunpack.c.h.b16 %v140
    %v325 = vunpack.c.l.b16 %v141
    %v326 = vunpack.c.h.b16 %v141
    %v327 = vunpack.c.l.b16 %v142
    %v328 = vunpack.c.h.b16 %v142
    %v329 = vunpack.c.l.b16 %v143
    %v330 = vunpack.c.h.b16 %v143
    %v331 = vunpack.c.l.b16 %v144
    %v332 = vunpack.c.h.b16 %v144
    %v333 = vunpack.c.l.b16 %v145
    %v334 = vunpack.c.h.b16 %v145
    %v335 = vunpack.c.l.b16 %v146
    %v336 = vunpack.c.h.b16 %v146
    %v337 = vunpack.c.l.b16 %v147
    %v338 = vunpack.c.h.b16 %v147
    %v339 = vunpack.c.l.b16 %v148
    %v340 = vunpack.c.h.b16 %v148
    %v341 = vunpack.c.l.b16 %v149
    %v342 = vunpack.c.h.b16 %v149
    %v343 = vunpack.c.l.b16 %v150
    %v344 = vunpack.c.h.b16 %v150
    %v345 = vunpack.c.l.b16 %v151
    %v346 = vunpack.c.h.b16 %v151
    %v347 = vunpack.c.l.b16 %v152
    %v348 = vunpack.c.h.b16 %v152
    %v349 = vunpack.c.l.b16 %v153
    %v350 = vunpack.c.h.b16 %v153
    %v351 = vunpack.c.l.b16 %v154
    %v352 = vunpack.c.h.b16 %v154
    %v353 = vunpack.c.l.b16 %v155
    %v354 = vunpack.c.h.b16 %v155
    %v355 = vunpack.c.l.b16 %v156
    %v356 = vunpack.c.h.b16 %v156
    %v357 = vunpack.c.l.b16 %v157
    %v358 = vunpack.c.h.b16 %v157
    %v359 = vunpack.c.l.b16 %v158
    %v360 = vunpack.c.h.b16 %v158
    %v361 = vpack.c.b16 %v237, %v233
    %v362 = vpack.c.b16 %v238, %v234
    %v363 = vpack.c.b16 %v239, %v235
    %v364 = vpack.c.b16 %v240, %v236
    %v365 = vpack.c.b16 %v245, %v241
    %v366 = vpack.c.b16 %v246, %v242
    %v367 = vpack.c.b16 %v247, %v243
    %v368 = vpack.c.b16 %v248, %v244
    %v369 = vpack.c.b16 %v253, %v249
    %v370 = vpack.c.b16 %v254, %v250
    %v371 = vpack.c.b16 %v255, %v251
    %v372 = vpack.c.b16 %v256, %v252
    %v373 = vpack.c.b16 %v261, %v257
    %v374 = vpack.c.b16 %v262, %v258
    %v375 = vpack.c.b16 %v263, %v259
    %v376 = vpack.c.b16 %v264, %v260
    %v377 = vpack.c.b16 %v269, %v265
    %v378 = vpack.c.b16 %v270, %v266
    %v379 = vpack.c.b16 %v271, %v267
    %v380 = vpack.c.b16 %v272, %v268
    %v381 = vpack.c.b16 %v277, %v273
    %v382 = vpack.c.b16 %v278, %v274
    %v383 = vpack.c.b16 %v279, %v275
    %v384 = vpack.c.b16 %v280, %v276
    %v385 = vpack.c.b16 %v285, %v281
    %v386 = vpack.c.b16 %v286, %v282
    %v387 = vpack.c.b16 %v287, %v283
    %v388 = vpack.c.b16 %v288, %v284
    %v389 = vpack.c.b16 %v293, %v289
    %v390 = vpack.c.b16 %v294, %v290
    %v391 = vpack.c.b16 %v295, %v291
    %v392 = vpack.c.b16 %v296, %v292
    %v393 = vpack.c.b16 %v301, %v297
    %v394 = vpack.c.b16 %v302, %v298
    %v395 = vpack.c.b16 %v303, %v299
    %v396 = vpack.c.b16 %v304, %v300
    %v397 = vpack.c.b16 %v309, %v305
    %v398 = vpack.c.b16 %v310, %v306
    %v399 = vpack.c.b16 %v311, %v307
    %v400 = vpack.c.b16 %v312, %v308
    %v401 = vpack.c.b16 %v317, %v313
    %v402 = vpack.c.b16 %v318, %v314
    %v403 = vpack.c.b16 %v319, %v315
    %v404 = vpack.c.b16 %v320, %v316
    %v405 = vpack.c.b16 %v325, %v321
    %v406 = vpack.c.b16 %v326, %v322
    %v407 = vpack.c.b16 %v327, %v323
    %v408 = vpack.c.b16 %v328, %v324
    %v409 = vpack.c.b16 %v333, %v329
    %v410 = vpack.c.b16 %v334, %v330
    %v411 = vpack.c.b16 %v335, %v331
    %v412 = vpack.c.b16 %v336, %v332
    %v413 = vpack.c.b16 %v341, %v337
    %v414 = vpack.c.b16 %v342, %v338
    %v415 = vpack.c.b16 %v343, %v339
    %v416 = vpack.c.b16 %v344, %v340
    %v417 = vpack.c.b16 %v349, %v345
    %v418 = vpack.c.b16 %v350, %v346
    %v419 = vpack.c.b16 %v351, %v347
    %v420 = vpack.c.b16 %v352, %v348
    %v421 = vpack.c.b16 %v357, %v353
    %v422 = vpack.c.b16 %v358, %v354
    %v423 = vpack.c.b16 %v359, %v355
    %v424 = vpack.c.b16 %v360, %v356
    %489 = vmatpush.bf16.msra.mxu0 %v389
    %490 = vmatpush.bf16.msra.mxu0 %v385
    %491 = vmatpush.bf16.msra.mxu0 %v381
    %492 = vmatpush.bf16.msra.mxu0 %v377
    %493 = vmatpush.bf16.msra.mxu0 %v373
    %494 = vmatpush.bf16.msra.mxu0 %v369
    %495 = vmatpush.bf16.msra.mxu0 %v365
    %496 = vmatpush.bf16.msra.mxu0 %v361
    %497 = vmatmul.bf16.gmra.mxu0 %v87
    %v498 = vpop.f32.mrf.mxu0
    %v499 = vadd.f32 %v161, %v498
    %v500 = vpop.f32.mrf.mxu0
    %v501 = vadd.f32 %v161, %v500
    %502 = vdwg.mxu0
    %503 = vmatpush.bf16.msra.mxu0 %v421
    %504 = vmatpush.bf16.msra.mxu0 %v417
    %505 = vmatpush.bf16.msra.mxu0 %v413
    %506 = vmatpush.bf16.msra.mxu0 %v409
    %507 = vmatpush.bf16.msra.mxu0 %v405
    %508 = vmatpush.bf16.msra.mxu0 %v401
    %509 = vmatpush.bf16.msra.mxu0 %v397
    %510 = vmatpush.bf16.msra.mxu0 %v393
    %511 = vmatmul.bf16.gmra.mxu0 %v93
    %v512 = vpop.f32.mrf.mxu0
    %v513 = vadd.f32 %v499, %v512
    %v514 = vpop.f32.mrf.mxu0
    %v515 = vadd.f32 %v501, %v514
    %516 = vdwg.mxu0
    %517 = vmatpush.bf16.msra.mxu0 %v390
    %518 = vmatpush.bf16.msra.mxu0 %v386
    %519 = vmatpush.bf16.msra.mxu0 %v382
    %520 = vmatpush.bf16.msra.mxu0 %v378
    %521 = vmatpush.bf16.msra.mxu0 %v374
    %522 = vmatpush.bf16.msra.mxu0 %v370
    %523 = vmatpush.bf16.msra.mxu0 %v366
    %524 = vmatpush.bf16.msra.mxu0 %v362
    %525 = vmatmul.bf16.gmra.mxu0 %v87
    %v526 = vpop.f32.mrf.mxu0
    %v527 = vadd.f32 %v162, %v526
    %v528 = vpop.f32.mrf.mxu0
    %v529 = vadd.f32 %v162, %v528
    %530 = vdwg.mxu0
    %531 = vmatpush.bf16.msra.mxu0 %v422
    %532 = vmatpush.bf16.msra.mxu0 %v418
    %533 = vmatpush.bf16.msra.mxu0 %v414
    %534 = vmatpush.bf16.msra.mxu0 %v410
    %535 = vmatpush.bf16.msra.mxu0 %v406
    %536 = vmatpush.bf16.msra.mxu0 %v402
    %537 = vmatpush.bf16.msra.mxu0 %v398
    %538 = vmatpush.bf16.msra.mxu0 %v394
    %539 = vmatmul.bf16.gmra.mxu0 %v93
    %v540 = vpop.f32.mrf.mxu0
    %v541 = vadd.f32 %v527, %v540
    %v542 = vpop.f32.mrf.mxu0
    %v543 = vadd.f32 %v529, %v542
    %544 = vdwg.mxu0
    %545 = vmatpush.bf16.msra.mxu0 %v391
    %546 = vmatpush.bf16.msra.mxu0 %v387
    %547 = vmatpush.bf16.msra.mxu0 %v383
    %548 = vmatpush.bf16.msra.mxu0 %v379
    %549 = vmatpush.bf16.msra.mxu0 %v375
    %550 = vmatpush.bf16.msra.mxu0 %v371
    %551 = vmatpush.bf16.msra.mxu0 %v367
    %552 = vmatpush.bf16.msra.mxu0 %v363
    %553 = vmatmul.bf16.gmra.mxu0 %v87
    %v554 = vpop.f32.mrf.mxu0
    %v555 = vadd.f32 %v163, %v554
    %v556 = vpop.f32.mrf.mxu0
    %v557 = vadd.f32 %v163, %v556
    %558 = vdwg.mxu0
    %559 = vmatpush.bf16.msra.mxu0 %v423
    %560 = vmatpush.bf16.msra.mxu0 %v419
    %561 = vmatpush.bf16.msra.mxu0 %v415
    %562 = vmatpush.bf16.msra.mxu0 %v411
    %563 = vmatpush.bf16.msra.mxu0 %v407
    %564 = vmatpush.bf16.msra.mxu0 %v403
    %565 = vmatpush.bf16.msra.mxu0 %v399
    %566 = vmatpush.bf16.msra.mxu0 %v395
    %567 = vmatmul.bf16.gmra.mxu0 %v93
    %v568 = vpop.f32.mrf.mxu0
    %v569 = vadd.f32 %v555, %v568
    %v570 = vpop.f32.mrf.mxu0
    %v571 = vadd.f32 %v557, %v570
    %572 = vdwg.mxu0
    %573 = vmatpush.bf16.msra.mxu0 %v392
    %574 = vmatpush.bf16.msra.mxu0 %v388
    %575 = vmatpush.bf16.msra.mxu0 %v384
    %576 = vmatpush.bf16.msra.mxu0 %v380
    %577 = vmatpush.bf16.msra.mxu0 %v376
    %578 = vmatpush.bf16.msra.mxu0 %v372
    %579 = vmatpush.bf16.msra.mxu0 %v368
    %580 = vmatpush.bf16.msra.mxu0 %v364
    %581 = vmatmul.bf16.gmra.mxu0 %v87
    %v582 = vpop.f32.mrf.mxu0
    %v583 = vadd.f32 %v164, %v582
    %v584 = vpop.f32.mrf.mxu0
    %v585 = vadd.f32 %v164, %v584
    %586 = vdwg.mxu0
    %587 = vmatpush.bf16.msra.mxu0 %v424
    %588 = vmatpush.bf16.msra.mxu0 %v420
    %589 = vmatpush.bf16.msra.mxu0 %v416
    %590 = vmatpush.bf16.msra.mxu0 %v412
    %591 = vmatpush.bf16.msra.mxu0 %v408
    %592 = vmatpush.bf16.msra.mxu0 %v404
    %593 = vmatpush.bf16.msra.mxu0 %v400
    %594 = vmatpush.bf16.msra.mxu0 %v396
    %595 = vmatmul.bf16.gmra.mxu0 %v93
    %v596 = vpop.f32.mrf.mxu0
    %v597 = vadd.f32 %v583, %v596
    %v598 = vpop.f32.mrf.mxu0
    %v599 = vadd.f32 %v585, %v598
    %600 = vdwg.mxu0
    %v601 = vxor.u32 %v513, 2147483648
    %v602 = vxor.u32 %v515, 2147483648
    %v603 = vmul.f32 %v601, 1.442695
    %v604 = vpow.pop %v603
    %v605 = vmul.f32 %v602, 1.442695
    %v606 = vpow.pop %v605
    %v607 = vadd.f32 %v604, 1.0
    %v608 = vadd.f32 %v606, 1.0
    %v609 = vrcp.pop %v607
    %v610 = vmul.f32 %v607, %v609
    %v611 = vsub.f32 1.0, %v610
    %v612 = vmul.f32 %v609, %v611
    %v613 = vadd.f32 %v609, %v612
    %vm614 = vweird.f32 %v607
    %vm615 = vweird.f32 %v609
    %vm616 = vmor %vm614, %vm615
    %v617 = vsel %vm616, %v609, %v613
    %v618 = vand.u32 2147483647, %v607
    %vm619 = vcmp.eq.f32.partialorder %v618, 8.507059e+37
    %v620 = vand.u32 %v607, 2147483648
    %v621 = vor.u32 1.1754944e-38, %v620
    %v622 = vsel %vm619, %v621, %v617
    %v623 = vmul.f32 1.0, %v622
    %v624 = vrcp.pop %v608
    %v625 = vmul.f32 %v608, %v624
    %v626 = vsub.f32 1.0, %v625
    %v627 = vmul.f32 %v624, %v626
    %v628 = vadd.f32 %v624, %v627
    %vm629 = vweird.f32 %v608
    %vm630 = vweird.f32 %v624
    %vm631 = vmor %vm629, %vm630
    %v632 = vsel %vm631, %v624, %v628
    %v633 = vand.u32 2147483647, %v608
    %vm634 = vcmp.eq.f32.partialorder %v633, 8.507059e+37
    %v635 = vand.u32 %v608, 2147483648
    %v636 = vor.u32 1.1754944e-38, %v635
    %v637 = vsel %vm634, %v636, %v632
    %v638 = vmul.f32 1.0, %v637
    %v639 = vxor.u32 %v541, 2147483648
    %v640 = vxor.u32 %v543, 2147483648
    %v641 = vmul.f32 %v639, 1.442695
    %v642 = vpow.pop %v641
    %v643 = vmul.f32 %v640, 1.442695
    %v644 = vpow.pop %v643
    %v645 = vadd.f32 %v642, 1.0
    %v646 = vadd.f32 %v644, 1.0
    %v647 = vrcp.pop %v645
    %v648 = vmul.f32 %v645, %v647
    %v649 = vsub.f32 1.0, %v648
    %v650 = vmul.f32 %v647, %v649
    %v651 = vadd.f32 %v647, %v650
    %vm652 = vweird.f32 %v645
    %vm653 = vweird.f32 %v647
    %vm654 = vmor %vm652, %vm653
    %v655 = vsel %vm654, %v647, %v651
    %v656 = vand.u32 2147483647, %v645
    %vm657 = vcmp.eq.f32.partialorder %v656, 8.507059e+37
    %v658 = vand.u32 %v645, 2147483648
    %v659 = vor.u32 1.1754944e-38, %v658
    %v660 = vsel %vm657, %v659, %v655
    %v661 = vmul.f32 1.0, %v660
    %v662 = vrcp.pop %v646
    %v663 = vmul.f32 %v646, %v662
    %v664 = vsub.f32 1.0, %v663
    %v665 = vmul.f32 %v662, %v664
    %v666 = vadd.f32 %v662, %v665
    %vm667 = vweird.f32 %v646
    %vm668 = vweird.f32 %v662
    %vm669 = vmor %vm667, %vm668
    %v670 = vsel %vm669, %v662, %v666
    %v671 = vand.u32 2147483647, %v646
    %vm672 = vcmp.eq.f32.partialorder %v671, 8.507059e+37
    %v673 = vand.u32 %v646, 2147483648
    %v674 = vor.u32 1.1754944e-38, %v673
    %v675 = vsel %vm672, %v674, %v670
    %v676 = vmul.f32 1.0, %v675
    %v677 = vmul.f32 %v623, %v597
    %v678 = vmul.f32 %v638, %v599
    %v679 = vadd.f32 %v569, %v677
    %v680 = vadd.f32 %v571, %v678
    %v681 = vtanh.pop %v679
    %v682 = vtanh.pop %v680
    %v683 = vunpack.c.l.bf16 %v81
    %v684 = vunpack.c.l.bf16 %v82
    %v685 = vsub.f32 1.0, %v661
    %v686 = vsub.f32 1.0, %v676
    %v687 = vmul.f32 %v685, %v681
    %v688 = vmul.f32 %v686, %v682
    %v689 = vmul.f32 %v661, %v683
    %v690 = vmul.f32 %v676, %v684
    %v691 = vadd.f32 %v687, %v689
    %v692 = vadd.f32 %v688, %v690
    %693 = vst [vmem:[#allocation10] sm:$0xff] %v691
    %694 = vst [vmem:[#allocation10 + $0x8] sm:$0xff] %v692
    // Predicated region
    $region34: #{tpu_custom_call.1} parent=1 // pred_check
      _
    $region35: #{tpu_custom_call.1} parent=1 // pred_check_branch
      %696 = sbr.rel (0) target = $region37
    $region36: #{tpu_custom_call.1} parent=1 // pred_region
      %698 = vsyncadd [#allocation4], 0
      %s699 = sshll.u32 [#allocation10], 4
      %s700 = int_to_ptr.vmem [resolvable:$true] %s699
      %s701 = sshll.u32 %s4, 4
      %s702 = int_to_ptr.hbm [resolvable:$true] %s701
      %707 = dma.vmem_to_hbm [thread:$0]  %s700, 256, %s702, [#allocation4], 128, 128, 8
    $region37: #{tpu_custom_call.1} parent=1 // pred_fallthru
      _
    // Predicated region
    $region38: #{tpu_custom_call.1} parent=1 // pred_check
      _
    $region39: #{tpu_custom_call.1} parent=1 // pred_check_branch
      %709 = sbr.rel (0) target = $region41
    $region40: #{tpu_custom_call.1} parent=1 // pred_region
      %711 = dma.done [#allocation4], 256
    $region41: #{tpu_custom_call.1} parent=1 // pred_fallthru
      _
    %712 = vsyncpa [#allocation3], 1
    %713 = vsyncpa [#allocation6], 1
    %714 = vsyncpa [#allocation9], 1
    %715 = vsyncpa [#allocation4], 1

</llo_original>
